<compile_context>
chip_gen: v7x
topology: tpu7x:2x2x1
jax: 0.10.0
libtpu: 0.0.40
codegen_flags: <defaults>
</compile_context>

<pallas_src>
import functools

import jax
import jax.numpy as jnp
from jax import lax
from jax.experimental import pallas as pl
from jax.experimental.pallas import tpu as pltpu


def _cbr_kernel(w_ref, p_ref, g_ref, b_ref, o_ref, *scratch,
                eps, inv_m, bm, pad_cols, resident):
    """Fused conv-GEMM + BatchNorm(batch stats) + ReLU, lane-dense (C_out, M) output.

    w_ref:   (C_out, K)  bf16, resident across the grid
    p_ref:   (K, bm)     bf16, streamed M tile (im2col patches, K-major)
    g_ref/b_ref: (C_out, 1) f32, BN gamma / beta
    o_ref:   (C_out, bm) f32 output tile
    scratch: [conv_buf (C_out, M_pad) f32]  (only if resident)
             sum, sumsq, s0 (first-tile mean shift), scale, shift : (C_out, 1) f32
    """
    if resident:
        conv_buf, sum_ref, sq_ref, s0_ref, scale_ref, shift_ref = scratch
    else:
        sum_ref, sq_ref, s0_ref, scale_ref, shift_ref = scratch
        conv_buf = None

    phase = pl.program_id(0)
    j = pl.program_id(1)
    last_j = pl.num_programs(1) - 1

    # (C_out, K) @ (K, bm) -> (C_out, bm), f32 accumulation on the MXU.
    # (In resident mode this is dead in phase 1; K=36 makes it negligible next to
    #  the HBM bytes it lets us avoid.)
    conv_mm = jnp.dot(w_ref[...], p_ref[...], preferred_element_type=jnp.float32)

    @pl.when((phase == 0) & (j == 0))
    def _init():
        # Per-channel first-tile mean used as a shift for the sum/sumsq accumulation
        # (avoids E[x^2]-E[x]^2 catastrophic cancellation for large M).
        s0_ref[...] = jnp.mean(conv_mm, axis=-1, keepdims=True)
        sum_ref[...] = jnp.zeros_like(sum_ref)
        sq_ref[...] = jnp.zeros_like(sq_ref)

    @pl.when(phase == 0)
    def _accumulate():
        c = conv_mm - s0_ref[...]
        # Lane-axis (XLU) reductions -> per-channel partial statistics.
        sum_ref[...] += jnp.sum(c, axis=-1, keepdims=True)
        sq_ref[...] += jnp.sum(c * c, axis=-1, keepdims=True)
        if resident:
            off = pl.multiple_of(j * bm, bm)
            conv_buf[:, pl.ds(off, bm)] = conv_mm

    @pl.when((phase == 0) & (j == last_j))
    def _finalize_stats():
        s0 = s0_ref[...]
        # Zero-padded columns have conv == 0 exactly (no bias), but the shifted
        # accumulation counted them as (-s0); pad_cols is a static constant.
        s1 = sum_ref[...] + pad_cols * s0            # sum over real cols of (conv - s0)
        s2 = sq_ref[...] - pad_cols * s0 * s0        # sumsq over real cols of (conv - s0)
        mean_c = s1 * inv_m
        var = s2 * inv_m - mean_c * mean_c           # biased variance (PyTorch BN norm)
        inv_std = lax.rsqrt(var + eps)               # EUP slot (effectively free)
        scale = g_ref[...] * inv_std
        scale_ref[...] = scale
        shift_ref[...] = b_ref[...] - (s0 + mean_c) * scale

    @pl.when(phase == 1)
    def _normalize():
        if resident:
            off = pl.multiple_of(j * bm, bm)
            conv = conv_buf[:, pl.ds(off, bm)]
        else:
            conv = conv_mm
        o_ref[...] = jnp.maximum(
            conv * scale_ref[...] + shift_ref[...], 0.0).astype(o_ref.dtype)


def _round_up(a, b):
    return -(-a // b) * b


def _vmem_limit_bytes():
    """Hardware-aware VMEM budget: ~3/4 of physical, capped at 100 MiB, floored at 32 MiB."""
    cap = 64 * 1024 * 1024  # conservative default (v7x per-TC)
    try:
        info = pltpu.get_tpu_info()
        cap = int(getattr(info, "vmem_capacity_bytes", cap)) or cap
    except Exception:
        pass
    return max(32 * 1024 * 1024, min(100 * 1024 * 1024, (cap * 3) // 4))


def conv2d_batchnorm_relu(x, weight, bias, gamma, beta, *,
                          stride=1, padding=1, dilation=1, eps=1e-5,
                          block_m=2048):
    """x: (N, C_in, H, W) NCHW, weight: (C_out, C_in, kh, kw) OIHW. Returns f32 NCHW."""
    # Conv bias is mathematically cancelled by the training-mode BN mean subtraction,
    # so it is intentionally not used (saves a full VPU pass + an input DMA).
    # NOTE: not valid if this kernel is reused with eval-mode running statistics.
    del bias

    N, C_in, H, W = x.shape
    C_out, _, kh, kw = weight.shape
    H_out = (H + 2 * padding - dilation * (kh - 1) - 1) // stride + 1
    W_out = (W + 2 * padding - dilation * (kw - 1) - 1) // stride + 1
    M = N * H_out * W_out
    K = C_in * kh * kw

    # --- im2col, built directly in (K, M) layout, in bf16 from the start ------
    xp = jnp.pad(x.astype(jnp.bfloat16),
                 ((0, 0), (0, 0), (padding, padding), (padding, padding)))
    cols = []
    for i in range(kh):
        for j in range(kw):
            hs, ws = i * dilation, j * dilation
            cols.append(
                xp[:, :,
                   hs: hs + (H_out - 1) * stride + 1: stride,
                   ws: ws + (W_out - 1) * stride + 1: stride])
    col = jnp.stack(cols, axis=2)                       # (N, C_in, kh*kw, H_out, W_out) bf16
    # K index = c*(kh*kw) + i*kw + j  (matches weight.reshape(C_out, C_in*kh*kw))
    p_bf = col.transpose(1, 2, 0, 3, 4).reshape(K, M)   # (K, M) bf16, M index = (n, ho, wo)

    # --- M tiling (lane dimension): single tile when M is small ---------------
    bm = min(_round_up(M, 128), _round_up(block_m, 128))
    M_pad = _round_up(M, bm)
    if M_pad > M:
        # Padded patch columns are all-zero -> conv there is exactly 0; the stats
        # finalize corrects for the (shifted) contribution of these columns.
        p_bf = jnp.pad(p_bf, ((0, 0), (0, M_pad - M)))
    n_tiles = M_pad // bm
    pad_cols = M_pad - M

    w_bf = weight.reshape(C_out, K).astype(jnp.bfloat16)     # no transpose needed
    g2 = gamma.reshape(C_out, 1).astype(jnp.float32)
    b2 = beta.reshape(C_out, 1).astype(jnp.float32)

    # --- VMEM budget + conv-residency decision (hardware-aware) ---------------
    vmem_limit = _vmem_limit_bytes()
    conv_bytes = 4 * C_out * M_pad
    pipe_bytes = (2 * (K * bm * 2)          # double-buffered bf16 patch tile
                  + 2 * (C_out * bm * 4)    # double-buffered f32 output tile
                  + C_out * K * 2           # resident weight
                  + (1 << 16))              # small scratch / slack
    resident = (conv_bytes + pipe_bytes) <= int(0.8 * vmem_limit)

    small_scratch = [pltpu.VMEM((C_out, 1), jnp.float32)] * 5  # sum, sumsq, s0, scale, shift
    scratch_shapes = (([pltpu.VMEM((C_out, M_pad), jnp.float32)] if resident else [])
                      + small_scratch)

    if resident:
        # Freeze the patch block index during phase 1 -> no second patch read from HBM.
        patch_map = lambda p, j: (0, (1 - p) * j + p * (n_tiles - 1))
    else:
        patch_map = lambda p, j: (0, j)

    out = pl.pallas_call(
        functools.partial(_cbr_kernel, eps=float(eps), inv_m=1.0 / float(M),
                          bm=bm, pad_cols=float(pad_cols), resident=resident),
        grid=(2, n_tiles),                              # (phase, M tile); phase slowest
        in_specs=[
            pl.BlockSpec((C_out, K), lambda p, j: (0, 0)),   # weight, resident
            pl.BlockSpec((K, bm), patch_map),                # patch tile, streamed
            pl.BlockSpec((C_out, 1), lambda p, j: (0, 0)),   # gamma
            pl.BlockSpec((C_out, 1), lambda p, j: (0, 0)),   # beta
        ],
        # Output block index is constant (0) during phase 0, so the never-written
        # phase-0 output buffer is NOT streamed back to HBM; only phase-1 tiles are.
        out_specs=pl.BlockSpec((C_out, bm), lambda p, j: (0, p * j)),
        out_shape=jax.ShapeDtypeStruct((C_out, M_pad), jnp.float32),
        scratch_shapes=scratch_shapes,
        compiler_params=pltpu.CompilerParams(
            # Both axes are sequential dependencies (stat accumulation, then phases).
            dimension_semantics=("arbitrary", "arbitrary"),
            vmem_limit_bytes=vmem_limit,
        ),
    )(w_bf, p_bf, g2, b2)

    # Back to NCHW (one extra XLA layout pass; channel-major consumers could skip it).
    out = out[:, :M]
    return out.reshape(C_out, N, H_out, W_out).transpose(1, 0, 2, 3)


def _reference(x, weight, bias, gamma, beta, *, stride, padding, dilation, eps):
    conv = lax.conv_general_dilated(
        x, weight, (stride, stride), [(padding, padding), (padding, padding)],
        rhs_dilation=(dilation, dilation),
        dimension_numbers=("NCHW", "OIHW", "NCHW"))
    conv = conv + bias[None, :, None, None]          # bias kept here on purpose:
    mean = conv.mean(axis=(0, 2, 3), keepdims=True)  # it must cancel against the mean
    var = ((conv - mean) ** 2).mean(axis=(0, 2, 3), keepdims=True)
    y = (conv - mean) / jnp.sqrt(var + eps) * gamma[None, :, None, None] \
        + beta[None, :, None, None]
    return jnp.maximum(y, 0.0)


if __name__ == "__main__":
    # conv2DBatchNormRelu(in_channels=4, n_filters=8, k_size=3, stride=1, padding=1)
    N, C_in, H, W = 2, 4, 16, 16
    C_out, k_size, stride, padding, dilation = 8, 3, 1, 1, 1
    eps = 1e-5  # nn.BatchNorm2d default

    key = jax.random.PRNGKey(0)
    kx, kw_, kb, kg, kbe = jax.random.split(key, 5)
    # Quantize x / weight to bf16-representable values once, so the kernel's bf16 MXU
    # operands are lossless and the f32 reference is an apples-to-apples comparison.
    x = jax.random.normal(kx, (N, C_in, H, W), jnp.float32) \
        .astype(jnp.bfloat16).astype(jnp.float32)
    weight = (0.1 * jax.random.normal(kw_, (C_out, k_size, k_size, C_in).__class__(
        (C_out, C_in, k_size, k_size)), jnp.float32)) \
        .astype(jnp.bfloat16).astype(jnp.float32)
    bias = 0.1 * jax.random.normal(kb, (C_out,), jnp.float32)
    gamma = 1.0 + 0.1 * jax.random.normal(kg, (C_out,), jnp.float32)
    beta = 0.1 * jax.random.normal(kbe, (C_out,), jnp.float32)

    out = conv2d_batchnorm_relu(x, weight, bias, gamma, beta,
                                stride=stride, padding=padding,
                                dilation=dilation, eps=eps)
    out = jax.block_until_ready(out)

    ref = _reference(x, weight, bias, gamma, beta,
                     stride=stride, padding=padding, dilation=dilation, eps=eps)
    assert out.shape == (N, C_out, H, W), out.shape
    max_err = float(jnp.max(jnp.abs(out - ref)))
    assert jnp.allclose(out, ref, rtol=2e-3, atol=2e-3), max_err

    print("KERNEL_OK")
</pallas_src>

<mosaic_0001>
module attributes {stable_mosaic.version = 11 : i64} {
  func.func @_cbr_kernel(%arg0: i32, %arg1: i32, %arg2: memref<8x36xbf16, #tpu.memory_space<vmem>>, %arg3: memref<36x512xbf16, #tpu.memory_space<vmem>>, %arg4: memref<8x1xf32, #tpu.memory_space<vmem>>, %arg5: memref<8x1xf32, #tpu.memory_space<vmem>>, %arg6: memref<8x512xf32, #tpu.memory_space<vmem>>, %arg7: memref<8x512xf32, #tpu.memory_space<vmem>>, %arg8: memref<8x1xf32, #tpu.memory_space<vmem>>, %arg9: memref<8x1xf32, #tpu.memory_space<vmem>>, %arg10: memref<8x1xf32, #tpu.memory_space<vmem>>, %arg11: memref<8x1xf32, #tpu.memory_space<vmem>>, %arg12: memref<8x1xf32, #tpu.memory_space<vmem>>) attributes {dimension_semantics = [#tpu.dimension_semantics<arbitrary>, #tpu.dimension_semantics<arbitrary>], iteration_bounds = array<i64: 2, 1>, scalar_prefetch = 0 : i64, scratch_operands = 6 : i64, tpu.core_type = #tpu.core_type<tc>, window_params = [{pipeline_mode = #tpu.pipeline_mode<synchronous>, transform_indices = @transform_0, window_bounds = array<i64: 8, 36>}, {transform_indices = @transform_1, window_bounds = array<i64: 36, 512>}, {pipeline_mode = #tpu.pipeline_mode<synchronous>, transform_indices = @transform_2, window_bounds = array<i64: 8, 1>}, {pipeline_mode = #tpu.pipeline_mode<synchronous>, transform_indices = @transform_3, window_bounds = array<i64: 8, 1>}, {transform_indices = @transform_4, window_bounds = array<i64: 8, 512>}]} {
    %c0 = arith.constant 0 : index
    %c0_0 = arith.constant 0 : index
    %0 = vector.load %arg2[%c0, %c0_0] : memref<8x36xbf16, #tpu.memory_space<vmem>>, vector<8x36xbf16>
    %c0_1 = arith.constant 0 : index
    %c0_2 = arith.constant 0 : index
    %1 = vector.load %arg3[%c0_1, %c0_2] : memref<36x512xbf16, #tpu.memory_space<vmem>>, vector<36x512xbf16>
    %cst = arith.constant dense<0.000000e+00> : vector<8x512xf32>
    %2 = tpu.matmul %0, %1, %cst {dimension_numbers = #tpu.dot_dimension_numbers<[1], [0], [0], [1], [0, 0, 1, 1], [], []>} : vector<8x36xbf16>, vector<36x512xbf16>, vector<8x512xf32> -> vector<8x512xf32>
    %c0_i32 = arith.constant 0 : i32
    %3 = arith.cmpi eq, %arg0, %c0_i32 : i32
    %c0_i32_3 = arith.constant 0 : i32
    %4 = arith.cmpi eq, %arg1, %c0_i32_3 : i32
    %5 = arith.andi %3, %4 : i1
    %6 = arith.extui %5 : i1 to i32
    %c0_i32_4 = arith.constant 0 : i32
    %7 = arith.cmpi ne, %6, %c0_i32_4 : i32
    scf.if %7 {
      %cst_11 = arith.constant dense<0.000000e+00> : vector<8xf32>
      %19 = vector.multi_reduction <add>, %2, %cst_11 [1] : vector<8x512xf32> to vector<8xf32>
      %20 = vector.shape_cast %19 : vector<8xf32> to vector<8x1xf32>
      %cst_12 = arith.constant 5.120000e+02 : f32
      %21 = vector.broadcast %cst_12 : f32 to vector<8x1xf32>
      %22 = arith.divf %20, %21 : vector<8x1xf32>
      %c0_13 = arith.constant 0 : index
      %c0_14 = arith.constant 0 : index
      %23 = vector.load %arg10[%c0_13, %c0_14] : memref<8x1xf32, #tpu.memory_space<vmem>>, vector<8x1xf32>
      tpu.vector_store %arg10[%c0_13, %c0_14], %22 {strides = array<i32>} : memref<8x1xf32, #tpu.memory_space<vmem>>, vector<8x1xf32>,
      %cst_15 = arith.constant 0.000000e+00 : f32
      %24 = vector.broadcast %cst_15 : f32 to vector<8x1xf32>
      %c0_16 = arith.constant 0 : index
      %c0_17 = arith.constant 0 : index
      %25 = vector.load %arg8[%c0_16, %c0_17] : memref<8x1xf32, #tpu.memory_space<vmem>>, vector<8x1xf32>
      tpu.vector_store %arg8[%c0_16, %c0_17], %24 {strides = array<i32>} : memref<8x1xf32, #tpu.memory_space<vmem>>, vector<8x1xf32>,
      %cst_18 = arith.constant 0.000000e+00 : f32
      %26 = vector.broadcast %cst_18 : f32 to vector<8x1xf32>
      %c0_19 = arith.constant 0 : index
      %c0_20 = arith.constant 0 : index
      %27 = vector.load %arg9[%c0_19, %c0_20] : memref<8x1xf32, #tpu.memory_space<vmem>>, vector<8x1xf32>
      tpu.vector_store %arg9[%c0_19, %c0_20], %26 {strides = array<i32>} : memref<8x1xf32, #tpu.memory_space<vmem>>, vector<8x1xf32>,
    } else {
    }
    %c0_i32_5 = arith.constant 0 : i32
    %8 = arith.cmpi eq, %arg0, %c0_i32_5 : i32
    %9 = arith.extui %8 : i1 to i32
    %c0_i32_6 = arith.constant 0 : i32
    %10 = arith.cmpi ne, %9, %c0_i32_6 : i32
    scf.if %10 {
      %c0_11 = arith.constant 0 : index
      %c0_12 = arith.constant 0 : index
      %19 = vector.load %arg10[%c0_11, %c0_12] : memref<8x1xf32, #tpu.memory_space<vmem>>, vector<8x1xf32>
      %20 = vector.broadcast %19 : vector<8x1xf32> to vector<8x512xf32>
      %21 = arith.subf %2, %20 : vector<8x512xf32>
      %c0_13 = arith.constant 0 : index
      %c0_14 = arith.constant 0 : index
      %22 = vector.load %arg8[%c0_13, %c0_14] : memref<8x1xf32, #tpu.memory_space<vmem>>, vector<8x1xf32>
      %cst_15 = arith.constant dense<0.000000e+00> : vector<8xf32>
      %23 = vector.multi_reduction <add>, %21, %cst_15 [1] : vector<8x512xf32> to vector<8xf32>
      %24 = vector.shape_cast %23 : vector<8xf32> to vector<8x1xf32>
      %25 = arith.addf %22, %24 : vector<8x1xf32>
      %c0_16 = arith.constant 0 : index
      %c0_17 = arith.constant 0 : index
      %26 = vector.load %arg8[%c0_16, %c0_17] : memref<8x1xf32, #tpu.memory_space<vmem>>, vector<8x1xf32>
      tpu.vector_store %arg8[%c0_16, %c0_17], %25 {strides = array<i32>} : memref<8x1xf32, #tpu.memory_space<vmem>>, vector<8x1xf32>,
      %c0_18 = arith.constant 0 : index
      %c0_19 = arith.constant 0 : index
      %27 = vector.load %arg9[%c0_18, %c0_19] : memref<8x1xf32, #tpu.memory_space<vmem>>, vector<8x1xf32>
      %28 = arith.mulf %21, %21 : vector<8x512xf32>
      %cst_20 = arith.constant dense<0.000000e+00> : vector<8xf32>
      %29 = vector.multi_reduction <add>, %28, %cst_20 [1] : vector<8x512xf32> to vector<8xf32>
      %30 = vector.shape_cast %29 : vector<8xf32> to vector<8x1xf32>
      %31 = arith.addf %27, %30 : vector<8x1xf32>
      %c0_21 = arith.constant 0 : index
      %c0_22 = arith.constant 0 : index
      %32 = vector.load %arg9[%c0_21, %c0_22] : memref<8x1xf32, #tpu.memory_space<vmem>>, vector<8x1xf32>
      tpu.vector_store %arg9[%c0_21, %c0_22], %31 {strides = array<i32>} : memref<8x1xf32, #tpu.memory_space<vmem>>, vector<8x1xf32>,
      %c512_i32 = arith.constant 512 : i32
      %33 = arith.muli %arg1, %c512_i32 : i32
      %34 = tpu.assume_multiple %33, 512 : i32
      %c0_23 = arith.constant 0 : index
      %35 = arith.index_cast %34 : i32 to index
      %36 = vector.load %arg7[%c0_23, %35] : memref<8x512xf32, #tpu.memory_space<vmem>>, vector<8x512xf32>
      tpu.vector_store %arg7[%c0_23, %35], %2 {strides = array<i32>} : memref<8x512xf32, #tpu.memory_space<vmem>>, vector<8x512xf32>,
    } else {
    }
    %c0_i32_7 = arith.constant 0 : i32
    %11 = arith.cmpi eq, %arg0, %c0_i32_7 : i32
    %c0_i32_8 = arith.constant 0 : i32
    %12 = arith.cmpi eq, %arg1, %c0_i32_8 : i32
    %13 = arith.andi %11, %12 : i1
    %14 = arith.extui %13 : i1 to i32
    %c0_i32_9 = arith.constant 0 : i32
    %15 = arith.cmpi ne, %14, %c0_i32_9 : i32
    scf.if %15 {
      %c0_11 = arith.constant 0 : index
      %c0_12 = arith.constant 0 : index
      %19 = vector.load %arg10[%c0_11, %c0_12] : memref<8x1xf32, #tpu.memory_space<vmem>>, vector<8x1xf32>
      %c0_13 = arith.constant 0 : index
      %c0_14 = arith.constant 0 : index
      %20 = vector.load %arg8[%c0_13, %c0_14] : memref<8x1xf32, #tpu.memory_space<vmem>>, vector<8x1xf32>
      %cst_15 = arith.constant 0.000000e+00 : f32
      %21 = vector.broadcast %cst_15 : f32 to vector<8x1xf32>
      %22 = arith.mulf %21, %19 : vector<8x1xf32>
      %23 = arith.addf %20, %22 : vector<8x1xf32>
      %c0_16 = arith.constant 0 : index
      %c0_17 = arith.constant 0 : index
      %24 = vector.load %arg9[%c0_16, %c0_17] : memref<8x1xf32, #tpu.memory_space<vmem>>, vector<8x1xf32>
      %cst_18 = arith.constant 0.000000e+00 : f32
      %25 = vector.broadcast %cst_18 : f32 to vector<8x1xf32>
      %26 = arith.mulf %25, %19 : vector<8x1xf32>
      %27 = arith.mulf %26, %19 : vector<8x1xf32>
      %28 = arith.subf %24, %27 : vector<8x1xf32>
      %cst_19 = arith.constant 0.001953125 : f32
      %29 = vector.broadcast %cst_19 : f32 to vector<8x1xf32>
      %30 = arith.mulf %23, %29 : vector<8x1xf32>
      %cst_20 = arith.constant 0.001953125 : f32
      %31 = vector.broadcast %cst_20 : f32 to vector<8x1xf32>
      %32 = arith.mulf %28, %31 : vector<8x1xf32>
      %33 = arith.mulf %30, %30 : vector<8x1xf32>
      %34 = arith.subf %32, %33 : vector<8x1xf32>
      %cst_21 = arith.constant 9.99999974E-6 : f32
      %35 = vector.broadcast %cst_21 : f32 to vector<8x1xf32>
      %36 = arith.addf %34, %35 : vector<8x1xf32>
      %37 = math.rsqrt %36 : vector<8x1xf32>
      %c0_22 = arith.constant 0 : index
      %c0_23 = arith.constant 0 : index
      %38 = vector.load %arg4[%c0_22, %c0_23] : memref<8x1xf32, #tpu.memory_space<vmem>>, vector<8x1xf32>
      %39 = arith.mulf %38, %37 : vector<8x1xf32>
      %c0_24 = arith.constant 0 : index
      %c0_25 = arith.constant 0 : index
      %40 = vector.load %arg11[%c0_24, %c0_25] : memref<8x1xf32, #tpu.memory_space<vmem>>, vector<8x1xf32>
      tpu.vector_store %arg11[%c0_24, %c0_25], %39 {strides = array<i32>} : memref<8x1xf32, #tpu.memory_space<vmem>>, vector<8x1xf32>,
      %c0_26 = arith.constant 0 : index
      %c0_27 = arith.constant 0 : index
      %41 = vector.load %arg5[%c0_26, %c0_27] : memref<8x1xf32, #tpu.memory_space<vmem>>, vector<8x1xf32>
      %42 = arith.addf %19, %30 : vector<8x1xf32>
      %43 = arith.mulf %42, %39 : vector<8x1xf32>
      %44 = arith.subf %41, %43 : vector<8x1xf32>
      %c0_28 = arith.constant 0 : index
      %c0_29 = arith.constant 0 : index
      %45 = vector.load %arg12[%c0_28, %c0_29] : memref<8x1xf32, #tpu.memory_space<vmem>>, vector<8x1xf32>
      tpu.vector_store %arg12[%c0_28, %c0_29], %44 {strides = array<i32>} : memref<8x1xf32, #tpu.memory_space<vmem>>, vector<8x1xf32>,
    } else {
    }
    %c1_i32 = arith.constant 1 : i32
    %16 = arith.cmpi eq, %arg0, %c1_i32 : i32
    %17 = arith.extui %16 : i1 to i32
    %c0_i32_10 = arith.constant 0 : i32
    %18 = arith.cmpi ne, %17, %c0_i32_10 : i32
    scf.if %18 {
      %c512_i32 = arith.constant 512 : i32
      %19 = arith.muli %arg1, %c512_i32 : i32
      %20 = tpu.assume_multiple %19, 512 : i32
      %c0_11 = arith.constant 0 : index
      %21 = arith.index_cast %20 : i32 to index
      %22 = vector.load %arg7[%c0_11, %21] : memref<8x512xf32, #tpu.memory_space<vmem>>, vector<8x512xf32>
      %c0_12 = arith.constant 0 : index
      %c0_13 = arith.constant 0 : index
      %23 = vector.load %arg11[%c0_12, %c0_13] : memref<8x1xf32, #tpu.memory_space<vmem>>, vector<8x1xf32>
      %24 = vector.broadcast %23 : vector<8x1xf32> to vector<8x512xf32>
      %25 = arith.mulf %22, %24 : vector<8x512xf32>
      %c0_14 = arith.constant 0 : index
      %c0_15 = arith.constant 0 : index
      %26 = vector.load %arg12[%c0_14, %c0_15] : memref<8x1xf32, #tpu.memory_space<vmem>>, vector<8x1xf32>
      %27 = vector.broadcast %26 : vector<8x1xf32> to vector<8x512xf32>
      %28 = arith.addf %25, %27 : vector<8x512xf32>
      %cst_16 = arith.constant 0.000000e+00 : f32
      %29 = vector.broadcast %cst_16 : f32 to vector<8x512xf32>
      %30 = arith.maximumf %28, %29 : vector<8x512xf32>
      %c0_17 = arith.constant 0 : index
      %c0_18 = arith.constant 0 : index
      %31 = vector.load %arg6[%c0_17, %c0_18] : memref<8x512xf32, #tpu.memory_space<vmem>>, vector<8x512xf32>
      tpu.vector_store %arg6[%c0_17, %c0_18], %30 {strides = array<i32>} : memref<8x512xf32, #tpu.memory_space<vmem>>, vector<8x512xf32>,
    } else {
    }
    return
  }
  func.func @transform_0(%arg0: i32, %arg1: i32) -> (i32, i32) {
    %c0_i32 = arith.constant 0 : i32
    %c0_i32_0 = arith.constant 0 : i32
    %c0_i32_1 = arith.constant 0 : i32
    return %c0_i32, %c0_i32_0 : i32, i32
  }
  func.func @transform_1(%arg0: i32, %arg1: i32) -> (i32, i32) {
    %c1_i32 = arith.constant 1 : i32
    %0 = arith.subi %c1_i32, %arg0 : i32
    %1 = arith.muli %0, %arg1 : i32
    %c0_i32 = arith.constant 0 : i32
    %2 = arith.muli %arg0, %c0_i32 : i32
    %3 = arith.addi %1, %2 : i32
    %c0_i32_0 = arith.constant 0 : i32
    %c0_i32_1 = arith.constant 0 : i32
    return %c0_i32_0, %3 : i32, i32
  }
  func.func @transform_2(%arg0: i32, %arg1: i32) -> (i32, i32) {
    %c0_i32 = arith.constant 0 : i32
    %c0_i32_0 = arith.constant 0 : i32
    %c0_i32_1 = arith.constant 0 : i32
    return %c0_i32, %c0_i32_0 : i32, i32
  }
  func.func @transform_3(%arg0: i32, %arg1: i32) -> (i32, i32) {
    %c0_i32 = arith.constant 0 : i32
    %c0_i32_0 = arith.constant 0 : i32
    %c0_i32_1 = arith.constant 0 : i32
    return %c0_i32, %c0_i32_0 : i32, i32
  }
  func.func @transform_4(%arg0: i32, %arg1: i32) -> (i32, i32) {
    %0 = arith.muli %arg0, %arg1 : i32
    %c0_i32 = arith.constant 0 : i32
    %c0_i32_0 = arith.constant 0 : i32
    return %c0_i32, %0 : i32, i32
  }
}

</mosaic_0001>

<llo_original>
// kernel: tpu_custom_call.1
$region0: #{tpu_custom_call.1}
  #allocation0 [shape = 'u32[]', space=smem, size = 0x4, offset = 0x4, fixed_abs, tag = 'smem constant byte address 0x4 - core index']
  #allocation1 [shape = 'u32[144,128]{1,0:T(1,128)}', space=vmem, size = 0x12000, scoped, tag = 'internal scratch']
  #allocation2 [shape = 'f32[8,512]{1,0:T(8,128)}', space=vmem, size = 0x4000, scoped, tag = 'scratch operand']
  #allocation3 [shape = 'f32[8,1]{1,0:T(8,128)}', space=vmem, size = 0x1000, scoped, tag = 'scratch operand']
  #allocation4 [shape = 'f32[8,1]{1,0:T(8,128)}', space=vmem, size = 0x1000, scoped, tag = 'scratch operand']
  #allocation5 [shape = 'f32[8,1]{1,0:T(8,128)}', space=vmem, size = 0x1000, scoped, tag = 'scratch operand']
  #allocation6 [shape = 'f32[8,1]{1,0:T(8,128)}', space=vmem, size = 0x1000, scoped, tag = 'scratch operand']
  #allocation7 [shape = 'f32[8,1]{1,0:T(8,128)}', space=vmem, size = 0x1000, scoped, tag = 'scratch operand']
  %s0 = inlined_call_operand.vmem [shape: bf16[8,36], index: 0, kind: input, shape index: {}]
  %s1 = inlined_call_operand.hbm [shape: bf16[36,512], index: 1, kind: input, shape index: {}]
  %s2 = inlined_call_operand.vmem [shape: f32[8,1], index: 2, kind: input, shape index: {}]
  %s3 = inlined_call_operand.vmem [shape: f32[8,1], index: 3, kind: input, shape index: {}]
  %s4 = inlined_call_operand.hbm [shape: f32[8,512], index: 4, kind: output, shape index: {}]
  %s5 = sld [smem:[#allocation0]]
  $region69: #{tpu_custom_call.1} parent=0
    _
  %s7 = ssub.s32 1, %s5
  %s8 = scalar_select 0, %s7, %s5
  $region1: #{tpu_custom_call.1} parent=0
    #allocation8 [shape = 'u8[81920]{0}', space=vmem, size = 0x14000, scoped, tag = 'input window, operand 1']
    #allocation9 [shape = 's32[2]{0}', space=sflag, size = 0x8, scoped, tag = 'scoped memory for tpu_custom_call.1']
    #allocation10 [shape = 's32[2]{0}', space=sflag, size = 0x8, scoped, tag = 'scoped memory for tpu_custom_call.1']
    #allocation11 [shape = 'u8[32768]{0}', space=vmem, size = 0x8000, scoped, tag = 'output window, operand 0']
    %9 = vsyncpa [#allocation9], 0
    %s10 = scalar_lea.sflag [#allocation9], 1
    %11 = vsyncpa %s10, 0
    %12 = vsyncpa [#allocation10], 0
    %s13 = scalar_lea.sflag [#allocation10], 1
    %14 = vsyncpa %s13, 0
    loop: start=0, step=1, limit=4
    $region2: #{tpu_custom_call.1} parent=1 // loop_pre_header
      _
    $region3: #{tpu_custom_call.1} parent=1 // loop_header
      %s16 = sphi 0, %s20
      %p17 = scmp.ge.s32.totalorder %s16, 4
      %s23 = sphi 0, %s35
      %s24 = sphi 0, %s31
      %s25 = sphi 0, %s23
      %s26 = sphi 0, %s24
      %s27 = sphi 0, %s25
      %s28 = sphi 0, %s26
      %s36 = sphi 0, %s36
      %s38 = sphi 0, %s36
      %s39 = sphi 0, %s38
      %s53 = sphi 0, %s39
      %s63 = sphi 0, %s65
      %s66 = sphi 0, %s63
      %s67 = sphi 0, %s66
      %s83 = sphi 0, %s67
      %s87 = sphi 0, %s87
      %s89 = sphi 0, %s87
      %s90 = sphi 0, %s89
      %s104 = sphi 0, %s90
      %s108 = sphi 0, %s108
      %s110 = sphi 0, %s108
      %s111 = sphi 0, %s110
      %s125 = sphi 0, %s111
      %s133 = sphi 0, %s135
      %s136 = sphi 0, %s133
      %s137 = sphi 0, %s136
      %s153 = sphi 0, %s137
    $region4: #{tpu_custom_call.1} parent=1 // loop_header_branch
      %19 = sbr.rel (%p17) target = $region8
    $region5: #{tpu_custom_call.1} parent=1 // loop_body
      %s21 = ssub.s32 %s16, 1
      %s22 = ssub.s32 %s16, 2
      %s29 = sadd.s32 1, %s24
      %p30 = scmp.ge.s32.totalorder %s29, 1
      %s31 = scalar_select %p30, 0, %s29
      %s32 = sadd.s32 1, %s23
      %s33 = scalar_select %p30, %s32, %s23
      %p34 = scmp.ge.s32.totalorder %s33, 2
      %s35 = scalar_select %p34, 0, %s33
      %s37 = sadd.s32 %s36, 1
      %p40 = scmp.eq.s32.totalorder %s16, 1
      %p41 = scmp.ne.s32.totalorder %s36, %s38
      %p42 = scmp.eq.s32.totalorder %s16, 0
      %p43 = por %p41, %p42
      %p44 = scmp.ne.s32.totalorder %s36, %s38
      %p45 = scmp.eq.s32.totalorder %s21, 1
      %p46 = por %p44, %p45
      %p47 = scmp.ne.s32.totalorder %s38, %s39
      %p48 = scmp.eq.s32.totalorder %s21, 0
      %p49 = por %p47, %p48
      %p50 = scmp.ne.s32.totalorder %s38, %s39
      %p51 = scmp.eq.s32.totalorder %s22, 1
      %p52 = por %p50, %p51
      %p54 = scmp.ne.s32.totalorder %s39, %s53
      %p55 = scmp.eq.s32.totalorder %s22, 0
      %p56 = por %p54, %p55
      %s57 = ssub.s32 1, %s23
      %s58 = smul.u32 %s57, %s24
      %s59 = ssub.s32 1, %s35
      %s60 = smul.u32 %s59, %s31
      %s61 = ssub.s32 %s58, %s60
      %p62 = scmp.eq.s32.totalorder %s61, 0
      %s64 = sadd.s32 %s63, 1
      %s65 = scalar_select %p62, %s63, %s64
      %p68 = pneg %p62
      %p69 = scmp.eq.s32.totalorder %s16, 1
      %p70 = por %p68, %p69
      %p71 = scmp.ne.s32.totalorder %s63, %s66
      %p72 = scmp.eq.s32.totalorder %s16, 0
      %p73 = por %p71, %p72
      %p74 = scmp.ne.s32.totalorder %s63, %s66
      %p75 = scmp.eq.s32.totalorder %s21, 1
      %p76 = por %p74, %p75
      %p77 = scmp.ne.s32.totalorder %s66, %s67
      %p78 = scmp.eq.s32.totalorder %s21, 0
      %p79 = por %p77, %p78
      %p80 = scmp.ne.s32.totalorder %s66, %s67
      %p81 = scmp.eq.s32.totalorder %s22, 1
      %p82 = por %p80, %p81
      %p84 = scmp.ne.s32.totalorder %s67, %s83
      %p85 = scmp.eq.s32.totalorder %s22, 0
      %p86 = por %p84, %p85
      %s88 = sadd.s32 %s87, 1
      %p91 = scmp.eq.s32.totalorder %s16, 1
      %p92 = scmp.ne.s32.totalorder %s87, %s89
      %p93 = scmp.eq.s32.totalorder %s16, 0
      %p94 = por %p92, %p93
      %p95 = scmp.ne.s32.totalorder %s87, %s89
      %p96 = scmp.eq.s32.totalorder %s21, 1
      %p97 = por %p95, %p96
      %p98 = scmp.ne.s32.totalorder %s89, %s90
      %p99 = scmp.eq.s32.totalorder %s21, 0
      %p100 = por %p98, %p99
      %p101 = scmp.ne.s32.totalorder %s89, %s90
      %p102 = scmp.eq.s32.totalorder %s22, 1
      %p103 = por %p101, %p102
      %p105 = scmp.ne.s32.totalorder %s90, %s104
      %p106 = scmp.eq.s32.totalorder %s22, 0
      %p107 = por %p105, %p106
      %s109 = sadd.s32 %s108, 1
      %p112 = scmp.eq.s32.totalorder %s16, 1
      %p113 = scmp.ne.s32.totalorder %s108, %s110
      %p114 = scmp.eq.s32.totalorder %s16, 0
      %p115 = por %p113, %p114
      %p116 = scmp.ne.s32.totalorder %s108, %s110
      %p117 = scmp.eq.s32.totalorder %s21, 1
      %p118 = por %p116, %p117
      %p119 = scmp.ne.s32.totalorder %s110, %s111
      %p120 = scmp.eq.s32.totalorder %s21, 0
      %p121 = por %p119, %p120
      %p122 = scmp.ne.s32.totalorder %s110, %s111
      %p123 = scmp.eq.s32.totalorder %s22, 1
      %p124 = por %p122, %p123
      %p126 = scmp.ne.s32.totalorder %s111, %s125
      %p127 = scmp.eq.s32.totalorder %s22, 0
      %p128 = por %p126, %p127
      %s129 = smul.u32 %s23, %s24
      %s130 = smul.u32 %s35, %s31
      %s131 = ssub.s32 %s129, %s130
      %p132 = scmp.eq.s32.totalorder %s131, 0
      %s134 = sadd.s32 %s133, 1
      %s135 = scalar_select %p132, %s133, %s134
      %p138 = pneg %p132
      %p139 = scmp.eq.s32.totalorder %s16, 1
      %p140 = por %p138, %p139
      %p141 = scmp.ne.s32.totalorder %s133, %s136
      %p142 = scmp.eq.s32.totalorder %s16, 0
      %p143 = por %p141, %p142
      %p144 = scmp.ne.s32.totalorder %s133, %s136
      %p145 = scmp.eq.s32.totalorder %s21, 1
      %p146 = por %p144, %p145
      %p147 = scmp.ne.s32.totalorder %s136, %s137
      %p148 = scmp.eq.s32.totalorder %s21, 0
      %p149 = por %p147, %p148
      %p150 = scmp.ne.s32.totalorder %s136, %s137
      %p151 = scmp.eq.s32.totalorder %s22, 1
      %p152 = por %p150, %p151
      %p154 = scmp.ne.s32.totalorder %s137, %s153
      %p155 = scmp.eq.s32.totalorder %s22, 0
      %p156 = por %p154, %p155
      %p157 = scmp.le.s32.totalorder 1, %s16
      %p158 = scmp.lt.s32.totalorder %s16, 3
      %p159 = pnand %p157, %p158
      %p160 = pneg %p159
      // Predicated region
      $region9: #{tpu_custom_call.1} parent=5 // pred_check
        _
      $region10: #{tpu_custom_call.1} parent=5 // pred_check_branch
        %162 = sbr.rel (%p159) target = $region12
      $region11: #{tpu_custom_call.1} parent=5 // pred_region
        %s163 = ssub.s32 %s16, 1
        // Predicated region
        $region13: #{tpu_custom_call.1} parent=11 // pred_check
          %p164 = pneg %p49
        $region14: #{tpu_custom_call.1} parent=11 // pred_check_branch
          %166 = sbr.rel (%p164) target = $region16
        $region15: #{tpu_custom_call.1} parent=11 // pred_region
          _
        $region16: #{tpu_custom_call.1} parent=11 // pred_fallthru
          _
        // Predicated region
        $region17: #{tpu_custom_call.1} parent=11 // pred_check
          %p167 = pneg %p100
        $region18: #{tpu_custom_call.1} parent=11 // pred_check_branch
          %169 = sbr.rel (%p167) target = $region20
        $region19: #{tpu_custom_call.1} parent=11 // pred_region
          _
        $region20: #{tpu_custom_call.1} parent=11 // pred_fallthru
          _
        // Predicated region
        $region21: #{tpu_custom_call.1} parent=11 // pred_check
          %p170 = pneg %p121
        $region22: #{tpu_custom_call.1} parent=11 // pred_check_branch
          %172 = sbr.rel (%p170) target = $region24
        $region23: #{tpu_custom_call.1} parent=11 // pred_region
          _
        $region24: #{tpu_custom_call.1} parent=11 // pred_fallthru
          _
      $region12: #{tpu_custom_call.1} parent=5 // pred_fallthru
        _
      %p173 = scmp.lt.s32.totalorder %s16, 2
      // Predicated region
      $region25: #{tpu_custom_call.1} parent=5 // pred_check
        %p174 = pneg %p173
      $region26: #{tpu_custom_call.1} parent=5 // pred_check_branch
        %176 = sbr.rel (%p174) target = $region28
      $region27: #{tpu_custom_call.1} parent=5 // pred_region
        // Predicated region
        $region29: #{tpu_custom_call.1} parent=27 // pred_check
          %p177 = pneg %p73
        $region30: #{tpu_custom_call.1} parent=27 // pred_check_branch
          %179 = sbr.rel (%p177) target = $region32
        $region31: #{tpu_custom_call.1} parent=27 // pred_region
          %s180 = sand.u32 %s63, 1
          %s181 = scalar_lea.sflag [#allocation9], %s180
          %s182 = sand.u32 %s63, 1
          %s183 = smul.addr %s182, 80
          %s184 = scalar_lea.vmem [#allocation8], %s183
          %s185 = ssub.s32 1, %s23
          %s186 = smul.u32 %s185, %s24
          %s187 = smul.u32 4, %s186
          %s189 = ssub.s32 1280, 1280
          %190 = vsyncadd %s181, %s189
          %s191 = smul.addr %s187, 64
          %s192 = scalar_lea.hbm %s1, %s191
          %s193 = sshll.u32 %s184, 4
          %s194 = int_to_ptr.vmem [resolvable:$true] %s193
          %199 = dma.hbm_to_vmem [thread:$0]  %s192, 1280, %s194, %s181, 256, 256, 16
        $region32: #{tpu_custom_call.1} parent=27 // pred_fallthru
          _
      $region28: #{tpu_custom_call.1} parent=5 // pred_fallthru
        _
      %p200 = scmp.le.s32.totalorder 1, %s16
      %p201 = scmp.lt.s32.totalorder %s16, 3
      %p202 = pnand %p200, %p201
      %p203 = pneg %p202
      // Predicated region
      $region33: #{tpu_custom_call.1} parent=5 // pred_check
        _
      $region34: #{tpu_custom_call.1} parent=5 // pred_check_branch
        %205 = sbr.rel (%p202) target = $region36
      $region35: #{tpu_custom_call.1} parent=5 // pred_region
        %s206 = ssub.s32 %s16, 1
        %s207 = sand.u32 %s66, 1
        %s208 = scalar_lea.sflag [#allocation9], %s207
        %s209 = sand.u32 %s66, 1
        %s210 = smul.addr %s209, 80
        %s211 = scalar_lea.vmem [#allocation8], %s210
        // Predicated region
        $region37: #{tpu_custom_call.1} parent=35 // pred_check
          %p212 = pneg %p79
        $region38: #{tpu_custom_call.1} parent=35 // pred_check_branch
          %214 = sbr.rel (%p212) target = $region40
        $region39: #{tpu_custom_call.1} parent=35 // pred_region
          %215 = dma.done %s208, 1280
        $region40: #{tpu_custom_call.1} parent=35 // pred_fallthru
          _
        %p216 = pneg %p49
        %p217 = pneg %p46
        %s218 = sand.u32 %s66, 1
        %s219 = scalar_lea.sflag [#allocation9], %s218
        %s220 = sand.u32 %s66, 1
        %s221 = smul.addr %s220, 80
        %s222 = scalar_lea.vmem [#allocation8], %s221
        %p223 = pneg %p79
        %p224 = pneg %p76
        %p225 = pneg %p100
        %p226 = pneg %p97
        %p227 = pneg %p121
        %p228 = pneg %p118
        %p229 = pneg %p149
        %p230 = pneg %p146
        %s231 = sand.u32 %s136, 1
        %s232 = scalar_lea.sflag [#allocation10], %s231
        %s233 = sand.u32 %s136, 1
        %s234 = smul.addr %s233, 32
        %s235 = scalar_lea.vmem [#allocation11], %s234
        %s236 = ssub.s32 1, %s25
        %s237 = smul.u32 %s236, %s26
        %s238 = smul.u32 4, %s237
        %s239 = smul.u32 %s25, %s26
        %s240 = smul.u32 4, %s239
        %v242 = vld [vmem:[%s0] sm:$0xf]
        %v243 = vld [vmem:[%s211] sm:$0xff]
        %v244 = vld [vmem:[%s211 + $0x8] sm:$0xff]
        %v245 = vld [vmem:[%s211 + $0x10] sm:$0xff]
        %v246 = vld [vmem:[%s211 + $0x18] sm:$0xff]
        %v247 = vld [vmem:[%s211 + $0x20] sm:$0xff]
        %v248 = vld [vmem:[%s211 + $0x28] sm:$0xff]
        %v249 = vld [vmem:[%s211 + $0x30] sm:$0xff]
        %v250 = vld [vmem:[%s211 + $0x38] sm:$0xff]
        %v251 = vld [vmem:[%s211 + $0x40] sm:$0x33]
        %v252 = vld [vmem:[%s211 + $0x48] sm:$0x33]
        %v263 = vunpack.c.l.b16 %v243
        %v264 = vunpack.c.h.b16 %v243
        %v265 = vunpack.c.l.b16 %v244
        %v266 = vunpack.c.h.b16 %v244
        %v267 = vunpack.c.l.b16 %v245
        %v268 = vunpack.c.h.b16 %v245
        %v269 = vunpack.c.l.b16 %v246
        %v270 = vunpack.c.h.b16 %v246
        %v271 = vunpack.c.l.b16 %v247
        %v272 = vunpack.c.h.b16 %v247
        %v273 = vunpack.c.l.b16 %v248
        %v274 = vunpack.c.h.b16 %v248
        %v275 = vunpack.c.l.b16 %v249
        %v276 = vunpack.c.h.b16 %v249
        %v277 = vunpack.c.l.b16 %v250
        %v278 = vunpack.c.h.b16 %v250
        %v279 = vunpack.c.l.b16 %v251
        %v280 = vunpack.c.h.b16 %v251
        %v281 = vunpack.c.l.b16 %v252
        %v282 = vunpack.c.h.b16 %v252
        %v283 = vpack.c.b16 %v267, %v263
        %v284 = vpack.c.b16 %v268, %v264
        %v285 = vpack.c.b16 %v269, %v265
        %v286 = vpack.c.b16 %v270, %v266
        %v287 = vpack.c.b16 %v275, %v271
        %v288 = vpack.c.b16 %v276, %v272
        %v289 = vpack.c.b16 %v277, %v273
        %v290 = vpack.c.b16 %v278, %v274
        %v291 = vpack.c.b16 %v279, %v279
        %v292 = vpack.c.b16 %v280, %v280
        %v293 = vpack.c.b16 %v281, %v281
        %v294 = vpack.c.b16 %v282, %v282
        %vm303 = vcmask 293888
        %v305 = vsel %vm303, %v242, 0
        %vm307 = vcmask 1041408
        %v309 = vsel %vm307, %v291, 0
        %v312 = vsel %vm307, %v292, 0
        %v315 = vsel %vm307, %v293, 0
        %v318 = vsel %vm307, %v294, 0
        %320 = vmatprep.subr.bf16.mxu0 %v284
        %321 = vmatpush1.bf16.msra.mxu0 %v283
        %322 = vmatprep.subr.bf16.mxu0 %v288
        %323 = vmatpush1.bf16.msra.mxu0 %v287
        %324 = vmatprep.subr.bf16.mxu0 %v312
        %325 = vmatpush1.bf16.msra.mxu0 %v309
        %326 = vmatprep.subr.bf16.mxu0 0
        %327 = vmatpush1.bf16.msra.mxu0 0
        %328 = vmatprep.subr.bf16.mxu0 0
        %329 = vmatpush1.bf16.msra.mxu0 0
        %330 = vmatprep.subr.bf16.mxu0 0
        %331 = vmatpush1.bf16.msra.mxu0 0
        %332 = vmatprep.subr.bf16.mxu0 0
        %333 = vmatpush1.bf16.msra.mxu0 0
        %334 = vmatprep.subr.bf16.mxu0 0
        %335 = vmatpush1.bf16.msra.mxu0 0
        %336 = vmatprep.subr.bf16.mxu0 0
        %337 = vmatpush1.bf16.msra.mxu0 0
        %338 = vmatprep.subr.bf16.mxu0 0
        %339 = vmatpush1.bf16.msra.mxu0 0
        %340 = vmatprep.subr.bf16.mxu0 0
        %341 = vmatpush1.bf16.msra.mxu0 0
        %342 = vmatprep.subr.bf16.mxu0 0
        %343 = vmatpush1.bf16.msra.mxu0 0
        %344 = vmatprep.subr.bf16.mxu0 0
        %345 = vmatpush1.bf16.msra.mxu0 0
        %346 = vmatprep.subr.bf16.mxu0 0
        %347 = vmatpush1.bf16.msra.mxu0 0
        %348 = vmatprep.subr.bf16.mxu0 0
        %349 = vmatpush1.bf16.msra.mxu0 0
        %350 = vmatprep.subr.bf16.mxu0 0
        %351 = vmatpush1.bf16.msra.mxu0 0
        %352 = vmatprep.mubr.bf16.mxu0 0
        %353 = vmatmul.mubr.bf16.gmra.mrb[0].mxu0 %v305
        %v354 = vpop.f32.mrb[0].mxu0
        %v355 = vadd.f32 0.0, %v354
        %v356 = vpop.f32.mrb[0].mxu0
        %v357 = vadd.f32 0.0, %v356
        %v358 = vpop.f32.mrb[0].mxu0
        %v359 = vpop.f32.mrb[0].mxu0
        %360 = vdwg.mxu0
        %361 = vmatprep.subr.bf16.mxu0 %v286
        %362 = vmatpush1.bf16.msra.mxu0 %v285
        %363 = vmatprep.subr.bf16.mxu0 %v290
        %364 = vmatpush1.bf16.msra.mxu0 %v289
        %365 = vmatprep.subr.bf16.mxu0 %v318
        %366 = vmatpush1.bf16.msra.mxu0 %v315
        %367 = vmatprep.subr.bf16.mxu0 0
        %368 = vmatpush1.bf16.msra.mxu0 0
        %369 = vmatprep.subr.bf16.mxu0 0
        %370 = vmatpush1.bf16.msra.mxu0 0
        %371 = vmatprep.subr.bf16.mxu0 0
        %372 = vmatpush1.bf16.msra.mxu0 0
        %373 = vmatprep.subr.bf16.mxu0 0
        %374 = vmatpush1.bf16.msra.mxu0 0
        %375 = vmatprep.subr.bf16.mxu0 0
        %376 = vmatpush1.bf16.msra.mxu0 0
        %377 = vmatprep.subr.bf16.mxu0 0
        %378 = vmatpush1.bf16.msra.mxu0 0
        %379 = vmatprep.subr.bf16.mxu0 0
        %380 = vmatpush1.bf16.msra.mxu0 0
        %381 = vmatprep.subr.bf16.mxu0 0
        %382 = vmatpush1.bf16.msra.mxu0 0
        %383 = vmatprep.subr.bf16.mxu0 0
        %384 = vmatpush1.bf16.msra.mxu0 0
        %385 = vmatprep.subr.bf16.mxu0 0
        %386 = vmatpush1.bf16.msra.mxu0 0
        %387 = vmatprep.subr.bf16.mxu0 0
        %388 = vmatpush1.bf16.msra.mxu0 0
        %389 = vmatprep.subr.bf16.mxu0 0
        %390 = vmatpush1.bf16.msra.mxu0 0
        %391 = vmatprep.subr.bf16.mxu0 0
        %392 = vmatpush1.bf16.msra.mxu0 0
        %393 = vmatprep.mubr.bf16.mxu0 0
        %394 = vmatmul.mubr.bf16.gmra.mrb[0].mxu0 %v305
        %v395 = vpop.f32.mrb[0].mxu0
        %v396 = vadd.f32 0.0, %v395
        %v397 = vpop.f32.mrb[0].mxu0
        %v398 = vadd.f32 0.0, %v397
        %v399 = vpop.f32.mrb[0].mxu0
        %v400 = vpop.f32.mrb[0].mxu0
        %401 = vdwg.mxu0
        %p402 = scmp.eq.s32.totalorder %s25, 0
        %p403 = scmp.eq.s32.totalorder %s26, 0
        %p404 = pnand %p402, %p403
        %p405 = pneg %p404
        // Predicated region
        $region41: #{tpu_custom_call.1} parent=35 // pred_check
          _
        $region42: #{tpu_custom_call.1} parent=35 // pred_check_branch
          %407 = sbr.rel (%p404) target = $region44
        $region43: #{tpu_custom_call.1} parent=35 // pred_region
          %v408 = vadd.f32 %v355, %v357
          %v409 = vadd.f32 %v408, %v396
          %v410 = vadd.f32 %v409, %v398
          %411 = vadd.xlane.f32.xlu0 %v410
          %v412 = vpop.xlane.xlu0 %411
          %v413 = vrcp.pop 512.0
          %v414 = vmul.f32 %v412, %v413
          %vm415 = vcmask 7168
          %416 = vst.msk [vmem:[#allocation5] sm:$0xff] %vm415, %v414
          %417 = vst.msk [vmem:[#allocation3] sm:$0xff] %vm415, 0.0
          %418 = vst.msk [vmem:[#allocation4] sm:$0xff] %vm415, 0.0
        $region44: #{tpu_custom_call.1} parent=35 // pred_fallthru
          _
        // Predicated region
        $region45: #{tpu_custom_call.1} parent=35 // pred_check
          %p419 = pneg %p402
        $region46: #{tpu_custom_call.1} parent=35 // pred_check_branch
          %421 = sbr.rel (%p419) target = $region48
        $region47: #{tpu_custom_call.1} parent=35 // pred_region
          %v422 = vld [vmem:[#allocation5] sm:$0xff]
          %424 = vset.pattern.permute.xlu0 0
          %425 = vperm.xlu0 %424, %v422
          %v426 = vpop.permute.xlu0 %425
          %v428 = vsub.f32 %v355, %v426
          %v429 = vsub.f32 %v357, %v426
          %v430 = vsub.f32 %v396, %v426
          %v431 = vsub.f32 %v398, %v426
          %v432 = vld [vmem:[#allocation3] sm:$0xff]
          %v433 = vadd.f32 %v428, %v429
          %v434 = vadd.f32 %v433, %v430
          %v435 = vadd.f32 %v434, %v431
          %436 = vadd.xlane.f32.xlu0 %v435
          %v437 = vpop.xlane.xlu0 %436
          %v438 = vadd.f32 %v432, %v437
          %vm439 = vcmask 7168
          %440 = vst.msk [vmem:[#allocation3] sm:$0xff] %vm439, %v438
          %v441 = vld [vmem:[#allocation4] sm:$0xff]
          %v442 = vmul.f32 %v428, %v428
          %v443 = vmul.f32 %v429, %v429
          %v444 = vmul.f32 %v430, %v430
          %v445 = vmul.f32 %v431, %v431
          %v446 = vadd.f32 %v442, %v443
          %v447 = vadd.f32 %v446, %v444
          %v448 = vadd.f32 %v447, %v445
          %449 = vadd.xlane.f32.xlu0 %v448
          %v450 = vpop.xlane.xlu0 %449
          %v451 = vadd.f32 %v441, %v450
          %452 = vst.msk [vmem:[#allocation4] sm:$0xff] %vm439, %v451
          %s453 = smul.u32 %s26, 512
          %s454 = sshra.s32 %s453, 7
          %s455 = sand.u32 %s453, 127
          %s456 = smul.addr %s454, 8
          %s457 = scalar_lea.vmem [#allocation2], %s456
          %458 = vst [vmem:[%s457] sm:$0xff] %v355
          %459 = vst [vmem:[%s457 + $0x8] sm:$0xff] %v357
          %460 = vst [vmem:[%s457 + $0x10] sm:$0xff] %v396
          %461 = vst [vmem:[%s457 + $0x18] sm:$0xff] %v398
        $region48: #{tpu_custom_call.1} parent=35 // pred_fallthru
          _
        // Predicated region
        $region49: #{tpu_custom_call.1} parent=35 // pred_check
          _
        $region50: #{tpu_custom_call.1} parent=35 // pred_check_branch
          %463 = sbr.rel (%p404) target = $region52
        $region51: #{tpu_custom_call.1} parent=35 // pred_region
          %v464 = vld [vmem:[#allocation5] sm:$0xff]
          %v465 = vld [vmem:[#allocation3] sm:$0xff]
          %v466 = vmul.f32 %v464, 0.0
          %v467 = vadd.f32 %v465, %v466
          %v468 = vld [vmem:[#allocation4] sm:$0xff]
          %v469 = vmul.f32 %v466, %v464
          %v470 = vsub.f32 %v468, %v469
          %v471 = vmul.f32 %v467, 0.001953125
          %v472 = vmul.f32 %v470, 0.001953125
          %v473 = vmul.f32 %v471, %v471
          %v474 = vsub.f32 %v472, %v473
          %v475 = vadd.f32 %v474, 1e-05
          %v476 = vrsqrt.pop %v475
          %v477 = vld [vmem:[%s2] sm:$0xff]
          %v478 = vmul.f32 %v477, %v476
          %vm479 = vcmask 7168
          %480 = vst.msk [vmem:[#allocation6] sm:$0xff] %vm479, %v478
          %v481 = vld [vmem:[%s3] sm:$0xff]
          %v482 = vadd.f32 %v464, %v471
          %v483 = vmul.f32 %v482, %v478
          %v484 = vsub.f32 %v481, %v483
          %485 = vst.msk [vmem:[#allocation7] sm:$0xff] %vm479, %v484
        $region52: #{tpu_custom_call.1} parent=35 // pred_fallthru
          _
        %p486 = scmp.eq.s32.totalorder %s25, 1
        // Predicated region
        $region53: #{tpu_custom_call.1} parent=35 // pred_check
          %p487 = pneg %p486
        $region54: #{tpu_custom_call.1} parent=35 // pred_check_branch
          %489 = sbr.rel (%p487) target = $region56
        $region55: #{tpu_custom_call.1} parent=35 // pred_region
          %s490 = smul.u32 %s26, 512
          %s491 = sshra.s32 %s490, 7
          %s492 = sand.u32 %s490, 127
          %s493 = smul.addr %s491, 8
          %s494 = scalar_lea.vmem [#allocation2], %s493
          %v495 = vld [vmem:[%s494] sm:$0xff]
          %v496 = vld [vmem:[%s494 + $0x8] sm:$0xff]
          %v497 = vld [vmem:[%s494 + $0x10] sm:$0xff]
          %v498 = vld [vmem:[%s494 + $0x18] sm:$0xff]
          %v499 = vld [vmem:[#allocation6] sm:$0xff]
          %501 = vset.pattern.permute.xlu0 0
          %502 = vperm.xlu0 %501, %v499
          %v503 = vpop.permute.xlu0 %502
          %v505 = vmul.f32 %v495, %v503
          %v506 = vmul.f32 %v496, %v503
          %v507 = vmul.f32 %v497, %v503
          %v508 = vmul.f32 %v498, %v503
          %v509 = vld [vmem:[#allocation7] sm:$0xff]
          %511 = vset.pattern.permute.xlu0 0
          %512 = vperm.xlu0 %511, %v509
          %v513 = vpop.permute.xlu0 %512
          %v515 = vadd.f32 %v505, %v513
          %v516 = vadd.f32 %v506, %v513
          %v517 = vadd.f32 %v507, %v513
          %v518 = vadd.f32 %v508, %v513
          %v519 = vmax.f32 %v515, 0.0
          %v520 = vmax.f32 %v516, 0.0
          %v521 = vmax.f32 %v517, 0.0
          %v522 = vmax.f32 %v518, 0.0
          %523 = vst [vmem:[%s235] sm:$0xff] %v519
          %524 = vst [vmem:[%s235 + $0x8] sm:$0xff] %v520
          %525 = vst [vmem:[%s235 + $0x10] sm:$0xff] %v521
          %526 = vst [vmem:[%s235 + $0x18] sm:$0xff] %v522
        $region56: #{tpu_custom_call.1} parent=35 // pred_fallthru
          _
        %s527 = sand.u32 %s136, 1
        %s528 = scalar_lea.sflag [#allocation10], %s527
        %s529 = sand.u32 %s136, 1
        %s530 = smul.addr %s529, 32
        %s531 = scalar_lea.vmem [#allocation11], %s530
        // Predicated region
        $region57: #{tpu_custom_call.1} parent=35 // pred_check
          %p532 = pneg %p146
        $region58: #{tpu_custom_call.1} parent=35 // pred_check_branch
          %534 = sbr.rel (%p532) target = $region60
        $region59: #{tpu_custom_call.1} parent=35 // pred_region
          %s535 = smul.u32 %s25, %s26
          %s536 = smul.u32 4, %s535
          %s538 = ssub.s32 512, 512
          %539 = vsyncadd %s528, %s538
          %s540 = smul.addr %s536, 128
          %s541 = scalar_lea.hbm %s4, %s540
          %s543 = sshll.u32 %s531, 4
          %s544 = int_to_ptr.vmem [resolvable:$true] %s543
          %546 = dma.vmem_to_hbm [thread:$0]  %s544, 512, %s541, %s528
        $region60: #{tpu_custom_call.1} parent=35 // pred_fallthru
          _
      $region36: #{tpu_custom_call.1} parent=5 // pred_fallthru
        _
      %p547 = scmp.le.s32.totalorder 2, %s16
      // Predicated region
      $region61: #{tpu_custom_call.1} parent=5 // pred_check
        %p548 = pneg %p547
      $region62: #{tpu_custom_call.1} parent=5 // pred_check_branch
        %550 = sbr.rel (%p548) target = $region64
      $region63: #{tpu_custom_call.1} parent=5 // pred_region
        %s551 = ssub.s32 %s16, 2
        // Predicated region
        $region65: #{tpu_custom_call.1} parent=63 // pred_check
          %p552 = pneg %p152
        $region66: #{tpu_custom_call.1} parent=63 // pred_check_branch
          %554 = sbr.rel (%p552) target = $region68
        $region67: #{tpu_custom_call.1} parent=63 // pred_region
          %s555 = sand.u32 %s137, 1
          %s556 = scalar_lea.sflag [#allocation10], %s555
          %s557 = sand.u32 %s137, 1
          %s558 = smul.addr %s557, 32
          %s559 = scalar_lea.vmem [#allocation11], %s558
          %560 = dma.done %s556, 512
        $region68: #{tpu_custom_call.1} parent=63 // pred_fallthru
          _
      $region64: #{tpu_custom_call.1} parent=5 // pred_fallthru
        _
    $region6: #{tpu_custom_call.1} parent=1 // loop_footer
      %s20 = sadd.s32 1, %s16
    $region7: #{tpu_custom_call.1} parent=1 // loop_footer_branch
      %15 = sbr.rel target = $region3
    $region8: #{tpu_custom_call.1} parent=1 // loop_exit
      _
    %561 = vsyncpa [#allocation9], 1
    %s562 = scalar_lea.sflag [#allocation9], 1
    %563 = vsyncpa %s562, 1
    %564 = vsyncpa [#allocation10], 1
    %s565 = scalar_lea.sflag [#allocation10], 1
    %566 = vsyncpa %s565, 1

</llo_original>
